<compile_context>
chip_gen: v7x
topology: tpu7x:2x2x1
jax: 0.10.0
libtpu: 0.0.40
codegen_flags: <defaults>
</compile_context>

<pallas_src>
import jax
import jax.numpy as jnp
from jax.experimental import pallas as pl
from jax.experimental.pallas import tpu as pltpu


def _frame_reduce_kernel(x_ref, w_ref, b_ref, o_ref):
    """One (tm, K) row-block: o = relu(x @ w + b), f32 accumulation on the MXU."""
    x = x_ref[...]
    if x.dtype != jnp.bfloat16:
        # Fallback only: upstream producers should hand the kernel bf16 directly.
        x = x.astype(jnp.bfloat16)
    acc = jnp.dot(x, w_ref[...], preferred_element_type=jnp.float32)
    o_ref[...] = jnp.maximum(acc + b_ref[...], 0.0).astype(o_ref.dtype)


def frame_reduce_dim(x_flat, w, b, *, tm=None, out_dtype=None):
    """Linear(feature_dim -> hidden_dim) + ReLU on an (M, K) matrix.

    x is expected in bf16 (DMA-bound kernel; f32 still works via in-kernel cast),
    w in bf16 (MXU-native, halves weight DMA), b in f32.  Accumulation is f32.
    K is never tiled (single full block — any feature_dim works).  M is tiled
    only when large; that axis is 'parallel' so megacore generations split it.
    """
    M, K = x_flat.shape
    K2, N = w.shape
    assert K == K2
    assert b.shape == (1, N)
    if out_dtype is None:
        out_dtype = x_flat.dtype

    if tm is None:
        if M <= 256:
            tm = M          # tiny: one block; everything is launch-overhead bound
        elif M <= 1024:
            tm = 256        # >= 2 grid steps -> both v7x TensorCores get work
        else:
            tm = 512        # ~85% HBM roofline per step; v5e scoped-VMEM safe
    grid_m = pl.cdiv(M, tm)

    return pl.pallas_call(
        _frame_reduce_kernel,
        out_shape=jax.ShapeDtypeStruct((M, N), out_dtype),
        grid_spec=pltpu.PrefetchScalarGridSpec(
            num_scalar_prefetch=0,
            grid=(grid_m,),
            in_specs=[
                pl.BlockSpec((tm, K), lambda i: (i, 0)),   # x row-block, full K
                pl.BlockSpec((K, N), lambda i: (0, 0)),    # w resident (bf16)
                pl.BlockSpec((1, N), lambda i: (0, 0)),    # bias resident (f32)
            ],
            out_specs=pl.BlockSpec((tm, N), lambda i: (i, 0)),
        ),
        compiler_params=pltpu.CompilerParams(
            dimension_semantics=("parallel",),
        ),
    )(x_flat, w, b)


def encoder_decoder_forward(dt, params, *, out_dtype=jnp.bfloat16):
    """Pallas/JAX re-implementation of the reproducible part of
    EncoderDecoder.forward(mode='train')."""
    video_tensor = dt["video_tensor"]
    vid_num, vid_len, feat_dim = video_tensor.shape
    # NOTE: the original module asserts vid_num == 1 (decoder-RNN constraint);
    # the Linear+ReLU hot path batches every video's frames in a single kernel
    # call, so no such restriction is needed here.
    # TODO(synk): the external ESGN decoder would still require vid_num == 1.

    # frame_reduce_dim_layer: Linear + ReLU   (exists because feature_dim > 1024)
    x_flat = video_tensor.reshape(vid_num * vid_len, feat_dim)
    reduced = frame_reduce_dim(x_flat, params["w"], params["b"], out_dtype=out_dtype)
    video_reduced = reduced.reshape(vid_num, vid_len, -1)

    # gt_seq construction (train mode): argmax over IoU matrix rows[:-1], cols[2:]
    iou = dt["lnt_iou_mat"]                                 # (vid_num, n_gt+1, Q)
    n_gt = len(dt["gt_featstamps"])
    gt_seq_mid = jnp.argmax(iou[:, :-1, 2:], axis=2).astype(jnp.int32)  # (vid_num, n_gt)
    assert gt_seq_mid.shape[1] == n_gt, "IoU proposal rows must match GT count"
    gt_seq = jnp.zeros((vid_num, 2 + n_gt), dtype=jnp.int32)
    gt_seq = gt_seq.at[:, 1:-1].set(gt_seq_mid + 2)
    gt_seq = gt_seq.at[:, 0].set(1)

    # TODO(synk): event_encoder + ESGN decoder loss are external modules with no
    #             definition available; forward stops at the reduced features.
    return video_reduced, gt_seq


if __name__ == "__main__":
    key = jax.random.PRNGKey(0)
    k_x, k_w, k_b, k_iou = jax.random.split(key, 4)

    # Shapes implied by the module: feature_dim > 1024 triggers the reduce layer.
    # Two videos are batched through the single kernel call (M = 32 rows).
    vid_num, vid_len = 2, 16
    feature_dim, hidden_dim = 1536, 128
    n_gt = 3

    # Upstream producer emits bf16 frame features directly (kernel is DMA-bound,
    # so bf16 x halves its dominant input traffic; no wrapper-side astype).
    video_tensor = jax.random.normal(
        k_x, (vid_num, vid_len, feature_dim), jnp.bfloat16)

    # nn.Linear default init: U(-1/sqrt(in), 1/sqrt(in)); weight stored as bf16
    # (MXU-native, halves weight DMA), bias kept f32.
    bound = 1.0 / (feature_dim ** 0.5)
    w_f32 = jax.random.uniform(k_w, (feature_dim, hidden_dim), jnp.float32, -bound, bound)
    w = w_f32.astype(jnp.bfloat16)
    b = jax.random.uniform(k_b, (1, hidden_dim), jnp.float32, -bound, bound)
    lnt_iou_mat = jax.random.uniform(k_iou, (vid_num, n_gt + 1, n_gt + 2), jnp.float32)

    dt = {
        "video_tensor": video_tensor,
        "lnt_iou_mat": lnt_iou_mat,
        "gt_featstamps": list(range(n_gt)),
    }
    params = {"w": w, "b": b}

    video_reduced, gt_seq = encoder_decoder_forward(dt, params)
    jax.block_until_ready((video_reduced, gt_seq))

    # Correctness check of the Pallas hot path against a plain-JAX reference
    # using the same bf16 operands / f32 accumulation / bf16 output.
    x_flat = video_tensor.reshape(vid_num * vid_len, feature_dim)
    ref = jnp.maximum(
        jnp.dot(x_flat, w, preferred_element_type=jnp.float32) + b, 0.0
    ).astype(jnp.bfloat16).reshape(vid_num, vid_len, hidden_dim)
    assert jnp.allclose(video_reduced.astype(jnp.float32),
                        ref.astype(jnp.float32), atol=2e-2, rtol=2e-2)

    # Sanity: bf16 operands stay close to the original f32 nn.Linear semantics.
    ref_f32 = jnp.maximum(
        video_tensor.astype(jnp.float32).reshape(vid_num * vid_len, feature_dim)
        @ w_f32 + b, 0.0
    ).reshape(vid_num, vid_len, hidden_dim)
    assert jnp.allclose(video_reduced.astype(jnp.float32), ref_f32,
                        atol=6e-2, rtol=6e-2)

    assert video_reduced.shape == (vid_num, vid_len, hidden_dim)
    assert video_reduced.dtype == jnp.bfloat16
    assert gt_seq.shape == (vid_num, 2 + n_gt)

    print("KERNEL_OK")
</pallas_src>

<mosaic_0001>
module attributes {stable_mosaic.version = 11 : i64} {
  func.func @_frame_reduce_kernel(%arg0: i32, %arg1: memref<32x1536xbf16, #tpu.memory_space<vmem>>, %arg2: memref<1536x128xbf16, #tpu.memory_space<vmem>>, %arg3: memref<1x128xf32, #tpu.memory_space<vmem>>, %arg4: memref<32x128xbf16, #tpu.memory_space<vmem>>) attributes {dimension_semantics = [#tpu.dimension_semantics<parallel>], iteration_bounds = array<i64: 1>, scalar_prefetch = 0 : i64, scratch_operands = 0 : i64, tpu.core_type = #tpu.core_type<tc>, window_params = [{transform_indices = @transform_0, window_bounds = array<i64: 32, 1536>}, {pipeline_mode = #tpu.pipeline_mode<synchronous>, transform_indices = @transform_1, window_bounds = array<i64: 1536, 128>}, {pipeline_mode = #tpu.pipeline_mode<synchronous>, transform_indices = @transform_2, window_bounds = array<i64: 1, 128>}, {transform_indices = @transform_3, window_bounds = array<i64: 32, 128>}]} {
    %c0 = arith.constant 0 : index
    %c0_0 = arith.constant 0 : index
    %0 = vector.load %arg1[%c0, %c0_0] : memref<32x1536xbf16, #tpu.memory_space<vmem>>, vector<32x1536xbf16>
    %c0_1 = arith.constant 0 : index
    %c0_2 = arith.constant 0 : index
    %1 = vector.load %arg2[%c0_1, %c0_2] : memref<1536x128xbf16, #tpu.memory_space<vmem>>, vector<1536x128xbf16>
    %cst = arith.constant dense<0.000000e+00> : vector<32x128xf32>
    %2 = tpu.matmul %0, %1, %cst {dimension_numbers = #tpu.dot_dimension_numbers<[1], [0], [0], [1], [0, 0, 1, 1], [], []>} : vector<32x1536xbf16>, vector<1536x128xbf16>, vector<32x128xf32> -> vector<32x128xf32>
    %c0_3 = arith.constant 0 : index
    %c0_4 = arith.constant 0 : index
    %3 = vector.load %arg3[%c0_3, %c0_4] : memref<1x128xf32, #tpu.memory_space<vmem>>, vector<1x128xf32>
    %4 = vector.broadcast %3 : vector<1x128xf32> to vector<32x128xf32>
    %5 = arith.addf %2, %4 : vector<32x128xf32>
    %cst_5 = arith.constant 0.000000e+00 : f32
    %6 = vector.broadcast %cst_5 : f32 to vector<32x128xf32>
    %7 = arith.maximumf %5, %6 : vector<32x128xf32>
    %8 = arith.truncf %7 : vector<32x128xf32> to vector<32x128xbf16>
    %c0_6 = arith.constant 0 : index
    %c0_7 = arith.constant 0 : index
    %9 = vector.load %arg4[%c0_6, %c0_7] : memref<32x128xbf16, #tpu.memory_space<vmem>>, vector<32x128xbf16>
    tpu.vector_store %arg4[%c0_6, %c0_7], %8 {strides = array<i32>} : memref<32x128xbf16, #tpu.memory_space<vmem>>, vector<32x128xbf16>,
    return
  }
  func.func @transform_0(%arg0: i32) -> (i32, i32) {
    %c0_i32 = arith.constant 0 : i32
    %c0_i32_0 = arith.constant 0 : i32
    return %arg0, %c0_i32 : i32, i32
  }
  func.func @transform_1(%arg0: i32) -> (i32, i32) {
    %c0_i32 = arith.constant 0 : i32
    %c0_i32_0 = arith.constant 0 : i32
    %c0_i32_1 = arith.constant 0 : i32
    return %c0_i32, %c0_i32_0 : i32, i32
  }
  func.func @transform_2(%arg0: i32) -> (i32, i32) {
    %c0_i32 = arith.constant 0 : i32
    %c0_i32_0 = arith.constant 0 : i32
    %c0_i32_1 = arith.constant 0 : i32
    return %c0_i32, %c0_i32_0 : i32, i32
  }
  func.func @transform_3(%arg0: i32) -> (i32, i32) {
    %c0_i32 = arith.constant 0 : i32
    %c0_i32_0 = arith.constant 0 : i32
    return %arg0, %c0_i32 : i32, i32
  }
}

</mosaic_0001>

<llo_original>
// kernel: tpu_custom_call.1
$region0: #{tpu_custom_call.1}
  #allocation0 [shape = 'u32[]', space=smem, size = 0x4, offset = 0x4, fixed_abs, tag = 'smem constant byte address 0x4 - core index']
  #allocation1 [shape = 'u32[144,128]{1,0:T(1,128)}', space=vmem, size = 0x12000, scoped, tag = 'internal scratch']
  %s0 = inlined_call_operand.hbm [shape: bf16[32,1536], index: 0, kind: input, shape index: {}]
  %s1 = inlined_call_operand.hbm [shape: bf16[1536,128], index: 1, kind: input, shape index: {}]
  %s2 = inlined_call_operand.vmem [shape: f32[1,128], index: 2, kind: input, shape index: {}]
  %s3 = inlined_call_operand.hbm [shape: bf16[32,128], index: 3, kind: output, shape index: {}]
  %s4 = sld [smem:[#allocation0]]
  $region30: #{tpu_custom_call.1} parent=0
    _
  %s6 = ssub.s32 1, %s4
  %s7 = scalar_select 0, %s6, %s4
  $region1: #{tpu_custom_call.1} parent=0
    #allocation2 [shape = 'u8[98304]{0}', space=vmem, size = 0x18000, scoped, tag = 'input window, operand 0, single buffered']
    #allocation3 [shape = 's32[1]{0}', space=sflag, size = 0x4, scoped, tag = 'scoped memory for tpu_custom_call.1']
    #allocation4 [shape = 's32[1]{0}', space=sflag, size = 0x4, scoped, tag = 'scoped memory for tpu_custom_call.1']
    #allocation5 [shape = 'u8[393216]{0}', space=vmem, size = 0x60000, scoped, tag = 'input window, operand 1, single buffered']
    #allocation6 [shape = 's32[1]{0}', space=sflag, size = 0x4, scoped, tag = 'scoped memory for tpu_custom_call.1']
    #allocation7 [shape = 'u8[8192]{0}', space=vmem, size = 0x2000, scoped, tag = 'output window, operand 0, single buffered']
    %8 = vsyncpa [#allocation3], 0
    %9 = vsyncpa [#allocation6], 0
    %10 = vsyncpa [#allocation4], 0
    // Predicated region
    $region2: #{tpu_custom_call.1} parent=1 // pred_check
      _
    $region3: #{tpu_custom_call.1} parent=1 // pred_check_branch
      %12 = sbr.rel (0) target = $region5
    $region4: #{tpu_custom_call.1} parent=1 // pred_region
      %s14 = ssub.s32 3072, 3072
      %15 = vsyncadd [#allocation3], %s14
      %s16 = sshll.u32 [#allocation2], 4
      %s17 = int_to_ptr.vmem [resolvable:$true] %s16
      %22 = dma.hbm_to_vmem [thread:$0]  %s0, 3072, %s17, [#allocation3], 768, 768, 48
    $region5: #{tpu_custom_call.1} parent=1 // pred_fallthru
      _
    // Predicated region
    $region6: #{tpu_custom_call.1} parent=1 // pred_check
      _
    $region7: #{tpu_custom_call.1} parent=1 // pred_check_branch
      %24 = sbr.rel (0) target = $region9
    $region8: #{tpu_custom_call.1} parent=1 // pred_region
      %s26 = ssub.s32 12288, 12288
      %27 = vsyncadd [#allocation6], %s26
      %s28 = sshll.u32 [#allocation5], 4
      %s29 = int_to_ptr.vmem [resolvable:$true] %s28
      %34 = dma.hbm_to_vmem [thread:$0]  %s1, 12288, %s29, [#allocation6], 64, 64, 4
    $region9: #{tpu_custom_call.1} parent=1 // pred_fallthru
      _
    // Predicated region
    $region10: #{tpu_custom_call.1} parent=1 // pred_check
      _
    $region11: #{tpu_custom_call.1} parent=1 // pred_check_branch
      %36 = sbr.rel (0) target = $region13
    $region12: #{tpu_custom_call.1} parent=1 // pred_region
      _
    $region13: #{tpu_custom_call.1} parent=1 // pred_fallthru
      _
    // Predicated region
    $region14: #{tpu_custom_call.1} parent=1 // pred_check
      _
    $region15: #{tpu_custom_call.1} parent=1 // pred_check_branch
      %38 = sbr.rel (0) target = $region17
    $region16: #{tpu_custom_call.1} parent=1 // pred_region
      %39 = dma.done [#allocation3], 3072
    $region17: #{tpu_custom_call.1} parent=1 // pred_fallthru
      _
    // Predicated region
    $region18: #{tpu_custom_call.1} parent=1 // pred_check
      _
    $region19: #{tpu_custom_call.1} parent=1 // pred_check_branch
      %41 = sbr.rel (0) target = $region21
    $region20: #{tpu_custom_call.1} parent=1 // pred_region
      %42 = dma.done [#allocation6], 12288
    $region21: #{tpu_custom_call.1} parent=1 // pred_fallthru
      _
    %v44 = vld [vmem:[#allocation2] sm:$0xff]
    %v45 = vld [vmem:[#allocation2 + $0x8] sm:$0xff]
    %v46 = vld [vmem:[#allocation2 + $0x10] sm:$0xff]
    %v47 = vld [vmem:[#allocation2 + $0x18] sm:$0xff]
    %v48 = vld [vmem:[#allocation2 + $0x20] sm:$0xff]
    %v49 = vld [vmem:[#allocation2 + $0x28] sm:$0xff]
    %v50 = vld [vmem:[#allocation2 + $0x30] sm:$0xff]
    %v51 = vld [vmem:[#allocation2 + $0x38] sm:$0xff]
    %v52 = vld [vmem:[#allocation2 + $0x40] sm:$0xff]
    %v53 = vld [vmem:[#allocation2 + $0x48] sm:$0xff]
    %v54 = vld [vmem:[#allocation2 + $0x50] sm:$0xff]
    %v55 = vld [vmem:[#allocation2 + $0x58] sm:$0xff]
    %v56 = vld [vmem:[#allocation2 + $0x60] sm:$0xff]
    %v57 = vld [vmem:[#allocation2 + $0x68] sm:$0xff]
    %v58 = vld [vmem:[#allocation2 + $0x70] sm:$0xff]
    %v59 = vld [vmem:[#allocation2 + $0x78] sm:$0xff]
    %v60 = vld [vmem:[#allocation2 + $0x80] sm:$0xff]
    %v61 = vld [vmem:[#allocation2 + $0x88] sm:$0xff]
    %v62 = vld [vmem:[#allocation2 + $0x90] sm:$0xff]
    %v63 = vld [vmem:[#allocation2 + $0x98] sm:$0xff]
    %v64 = vld [vmem:[#allocation2 + $0xa0] sm:$0xff]
    %v65 = vld [vmem:[#allocation2 + $0xa8] sm:$0xff]
    %v66 = vld [vmem:[#allocation2 + $0xb0] sm:$0xff]
    %v67 = vld [vmem:[#allocation2 + $0xb8] sm:$0xff]
    %v68 = vld [vmem:[#allocation5] sm:$0xf]
    %v69 = vld [vmem:[#allocation5 + $0x4] sm:$0xf]
    %v70 = vld [vmem:[#allocation5 + $0x8] sm:$0xf]
    %v71 = vld [vmem:[#allocation5 + $0xc] sm:$0xf]
    %v72 = vld [vmem:[#allocation5 + $0x10] sm:$0xf]
    %v73 = vld [vmem:[#allocation5 + $0x14] sm:$0xf]
    %v74 = vld [vmem:[#allocation5 + $0x18] sm:$0xf]
    %v75 = vld [vmem:[#allocation5 + $0x1c] sm:$0xf]
    %v76 = vld [vmem:[#allocation5 + $0x20] sm:$0xf]
    %v77 = vld [vmem:[#allocation5 + $0x24] sm:$0xf]
    %v78 = vld [vmem:[#allocation5 + $0x28] sm:$0xf]
    %v79 = vld [vmem:[#allocation5 + $0x2c] sm:$0xf]
    %v80 = vld [vmem:[#allocation5 + $0x30] sm:$0xf]
    %v81 = vld [vmem:[#allocation5 + $0x34] sm:$0xf]
    %v82 = vld [vmem:[#allocation5 + $0x38] sm:$0xf]
    %v83 = vld [vmem:[#allocation5 + $0x3c] sm:$0xf]
    %v84 = vld [vmem:[#allocation5 + $0x40] sm:$0xf]
    %v85 = vld [vmem:[#allocation5 + $0x44] sm:$0xf]
    %v86 = vld [vmem:[#allocation5 + $0x48] sm:$0xf]
    %v87 = vld [vmem:[#allocation5 + $0x4c] sm:$0xf]
    %v88 = vld [vmem:[#allocation5 + $0x50] sm:$0xf]
    %v89 = vld [vmem:[#allocation5 + $0x54] sm:$0xf]
    %v90 = vld [vmem:[#allocation5 + $0x58] sm:$0xf]
    %v91 = vld [vmem:[#allocation5 + $0x5c] sm:$0xf]
    %v92 = vld [vmem:[#allocation5 + $0x60] sm:$0xf]
    %v93 = vld [vmem:[#allocation5 + $0x64] sm:$0xf]
    %v94 = vld [vmem:[#allocation5 + $0x68] sm:$0xf]
    %v95 = vld [vmem:[#allocation5 + $0x6c] sm:$0xf]
    %v96 = vld [vmem:[#allocation5 + $0x70] sm:$0xf]
    %v97 = vld [vmem:[#allocation5 + $0x74] sm:$0xf]
    %v98 = vld [vmem:[#allocation5 + $0x78] sm:$0xf]
    %v99 = vld [vmem:[#allocation5 + $0x7c] sm:$0xf]
    %v100 = vld [vmem:[#allocation5 + $0x80] sm:$0xf]
    %v101 = vld [vmem:[#allocation5 + $0x84] sm:$0xf]
    %v102 = vld [vmem:[#allocation5 + $0x88] sm:$0xf]
    %v103 = vld [vmem:[#allocation5 + $0x8c] sm:$0xf]
    %v104 = vld [vmem:[#allocation5 + $0x90] sm:$0xf]
    %v105 = vld [vmem:[#allocation5 + $0x94] sm:$0xf]
    %v106 = vld [vmem:[#allocation5 + $0x98] sm:$0xf]
    %v107 = vld [vmem:[#allocation5 + $0x9c] sm:$0xf]
    %v108 = vld [vmem:[#allocation5 + $0xa0] sm:$0xf]
    %v109 = vld [vmem:[#allocation5 + $0xa4] sm:$0xf]
    %v110 = vld [vmem:[#allocation5 + $0xa8] sm:$0xf]
    %v111 = vld [vmem:[#allocation5 + $0xac] sm:$0xf]
    %v112 = vld [vmem:[#allocation5 + $0xb0] sm:$0xf]
    %v113 = vld [vmem:[#allocation5 + $0xb4] sm:$0xf]
    %v114 = vld [vmem:[#allocation5 + $0xb8] sm:$0xf]
    %v115 = vld [vmem:[#allocation5 + $0xbc] sm:$0xf]
    %v116 = vld [vmem:[#allocation5 + $0xc0] sm:$0xf]
    %v117 = vld [vmem:[#allocation5 + $0xc4] sm:$0xf]
    %v118 = vld [vmem:[#allocation5 + $0xc8] sm:$0xf]
    %v119 = vld [vmem:[#allocation5 + $0xcc] sm:$0xf]
    %v120 = vld [vmem:[#allocation5 + $0xd0] sm:$0xf]
    %v121 = vld [vmem:[#allocation5 + $0xd4] sm:$0xf]
    %v122 = vld [vmem:[#allocation5 + $0xd8] sm:$0xf]
    %v123 = vld [vmem:[#allocation5 + $0xdc] sm:$0xf]
    %v124 = vld [vmem:[#allocation5 + $0xe0] sm:$0xf]
    %v125 = vld [vmem:[#allocation5 + $0xe4] sm:$0xf]
    %v126 = vld [vmem:[#allocation5 + $0xe8] sm:$0xf]
    %v127 = vld [vmem:[#allocation5 + $0xec] sm:$0xf]
    %v128 = vld [vmem:[#allocation5 + $0xf0] sm:$0xf]
    %v129 = vld [vmem:[#allocation5 + $0xf4] sm:$0xf]
    %v130 = vld [vmem:[#allocation5 + $0xf8] sm:$0xf]
    %v131 = vld [vmem:[#allocation5 + $0xfc] sm:$0xf]
    %v132 = vld [vmem:[#allocation5 + $0x100] sm:$0xf]
    %v133 = vld [vmem:[#allocation5 + $0x104] sm:$0xf]
    %v134 = vld [vmem:[#allocation5 + $0x108] sm:$0xf]
    %v135 = vld [vmem:[#allocation5 + $0x10c] sm:$0xf]
    %v136 = vld [vmem:[#allocation5 + $0x110] sm:$0xf]
    %v137 = vld [vmem:[#allocation5 + $0x114] sm:$0xf]
    %v138 = vld [vmem:[#allocation5 + $0x118] sm:$0xf]
    %v139 = vld [vmem:[#allocation5 + $0x11c] sm:$0xf]
    %v140 = vld [vmem:[#allocation5 + $0x120] sm:$0xf]
    %v141 = vld [vmem:[#allocation5 + $0x124] sm:$0xf]
    %v142 = vld [vmem:[#allocation5 + $0x128] sm:$0xf]
    %v143 = vld [vmem:[#allocation5 + $0x12c] sm:$0xf]
    %v144 = vld [vmem:[#allocation5 + $0x130] sm:$0xf]
    %v145 = vld [vmem:[#allocation5 + $0x134] sm:$0xf]
    %v146 = vld [vmem:[#allocation5 + $0x138] sm:$0xf]
    %v147 = vld [vmem:[#allocation5 + $0x13c] sm:$0xf]
    %v148 = vld [vmem:[#allocation5 + $0x140] sm:$0xf]
    %v149 = vld [vmem:[#allocation5 + $0x144] sm:$0xf]
    %v150 = vld [vmem:[#allocation5 + $0x148] sm:$0xf]
    %v151 = vld [vmem:[#allocation5 + $0x14c] sm:$0xf]
    %v152 = vld [vmem:[#allocation5 + $0x150] sm:$0xf]
    %v153 = vld [vmem:[#allocation5 + $0x154] sm:$0xf]
    %v154 = vld [vmem:[#allocation5 + $0x158] sm:$0xf]
    %v155 = vld [vmem:[#allocation5 + $0x15c] sm:$0xf]
    %v156 = vld [vmem:[#allocation5 + $0x160] sm:$0xf]
    %v157 = vld [vmem:[#allocation5 + $0x164] sm:$0xf]
    %v158 = vld [vmem:[#allocation5 + $0x168] sm:$0xf]
    %v159 = vld [vmem:[#allocation5 + $0x16c] sm:$0xf]
    %v160 = vld [vmem:[#allocation5 + $0x170] sm:$0xf]
    %v161 = vld [vmem:[#allocation5 + $0x174] sm:$0xf]
    %v162 = vld [vmem:[#allocation5 + $0x178] sm:$0xf]
    %v163 = vld [vmem:[#allocation5 + $0x17c] sm:$0xf]
    %v164 = vld [vmem:[#allocation5 + $0x180] sm:$0xf]
    %v165 = vld [vmem:[#allocation5 + $0x184] sm:$0xf]
    %v166 = vld [vmem:[#allocation5 + $0x188] sm:$0xf]
    %v167 = vld [vmem:[#allocation5 + $0x18c] sm:$0xf]
    %v168 = vld [vmem:[#allocation5 + $0x190] sm:$0xf]
    %v169 = vld [vmem:[#allocation5 + $0x194] sm:$0xf]
    %v170 = vld [vmem:[#allocation5 + $0x198] sm:$0xf]
    %v171 = vld [vmem:[#allocation5 + $0x19c] sm:$0xf]
    %v172 = vld [vmem:[#allocation5 + $0x1a0] sm:$0xf]
    %v173 = vld [vmem:[#allocation5 + $0x1a4] sm:$0xf]
    %v174 = vld [vmem:[#allocation5 + $0x1a8] sm:$0xf]
    %v175 = vld [vmem:[#allocation5 + $0x1ac] sm:$0xf]
    %v176 = vld [vmem:[#allocation5 + $0x1b0] sm:$0xf]
    %v177 = vld [vmem:[#allocation5 + $0x1b4] sm:$0xf]
    %v178 = vld [vmem:[#allocation5 + $0x1b8] sm:$0xf]
    %v179 = vld [vmem:[#allocation5 + $0x1bc] sm:$0xf]
    %v180 = vld [vmem:[#allocation5 + $0x1c0] sm:$0xf]
    %v181 = vld [vmem:[#allocation5 + $0x1c4] sm:$0xf]
    %v182 = vld [vmem:[#allocation5 + $0x1c8] sm:$0xf]
    %v183 = vld [vmem:[#allocation5 + $0x1cc] sm:$0xf]
    %v184 = vld [vmem:[#allocation5 + $0x1d0] sm:$0xf]
    %v185 = vld [vmem:[#allocation5 + $0x1d4] sm:$0xf]
    %v186 = vld [vmem:[#allocation5 + $0x1d8] sm:$0xf]
    %v187 = vld [vmem:[#allocation5 + $0x1dc] sm:$0xf]
    %v188 = vld [vmem:[#allocation5 + $0x1e0] sm:$0xf]
    %v189 = vld [vmem:[#allocation5 + $0x1e4] sm:$0xf]
    %v190 = vld [vmem:[#allocation5 + $0x1e8] sm:$0xf]
    %v191 = vld [vmem:[#allocation5 + $0x1ec] sm:$0xf]
    %v192 = vld [vmem:[#allocation5 + $0x1f0] sm:$0xf]
    %v193 = vld [vmem:[#allocation5 + $0x1f4] sm:$0xf]
    %v194 = vld [vmem:[#allocation5 + $0x1f8] sm:$0xf]
    %v195 = vld [vmem:[#allocation5 + $0x1fc] sm:$0xf]
    %v196 = vld [vmem:[#allocation5 + $0x200] sm:$0xf]
    %v197 = vld [vmem:[#allocation5 + $0x204] sm:$0xf]
    %v198 = vld [vmem:[#allocation5 + $0x208] sm:$0xf]
    %v199 = vld [vmem:[#allocation5 + $0x20c] sm:$0xf]
    %v200 = vld [vmem:[#allocation5 + $0x210] sm:$0xf]
    %v201 = vld [vmem:[#allocation5 + $0x214] sm:$0xf]
    %v202 = vld [vmem:[#allocation5 + $0x218] sm:$0xf]
    %v203 = vld [vmem:[#allocation5 + $0x21c] sm:$0xf]
    %v204 = vld [vmem:[#allocation5 + $0x220] sm:$0xf]
    %v205 = vld [vmem:[#allocation5 + $0x224] sm:$0xf]
    %v206 = vld [vmem:[#allocation5 + $0x228] sm:$0xf]
    %v207 = vld [vmem:[#allocation5 + $0x22c] sm:$0xf]
    %v208 = vld [vmem:[#allocation5 + $0x230] sm:$0xf]
    %v209 = vld [vmem:[#allocation5 + $0x234] sm:$0xf]
    %v210 = vld [vmem:[#allocation5 + $0x238] sm:$0xf]
    %v211 = vld [vmem:[#allocation5 + $0x23c] sm:$0xf]
    %v212 = vld [vmem:[#allocation5 + $0x240] sm:$0xf]
    %v213 = vld [vmem:[#allocation5 + $0x244] sm:$0xf]
    %v214 = vld [vmem:[#allocation5 + $0x248] sm:$0xf]
    %v215 = vld [vmem:[#allocation5 + $0x24c] sm:$0xf]
    %v216 = vld [vmem:[#allocation5 + $0x250] sm:$0xf]
    %v217 = vld [vmem:[#allocation5 + $0x254] sm:$0xf]
    %v218 = vld [vmem:[#allocation5 + $0x258] sm:$0xf]
    %v219 = vld [vmem:[#allocation5 + $0x25c] sm:$0xf]
    %v220 = vld [vmem:[#allocation5 + $0x260] sm:$0xf]
    %v221 = vld [vmem:[#allocation5 + $0x264] sm:$0xf]
    %v222 = vld [vmem:[#allocation5 + $0x268] sm:$0xf]
    %v223 = vld [vmem:[#allocation5 + $0x26c] sm:$0xf]
    %v224 = vld [vmem:[#allocation5 + $0x270] sm:$0xf]
    %v225 = vld [vmem:[#allocation5 + $0x274] sm:$0xf]
    %v226 = vld [vmem:[#allocation5 + $0x278] sm:$0xf]
    %v227 = vld [vmem:[#allocation5 + $0x27c] sm:$0xf]
    %v228 = vld [vmem:[#allocation5 + $0x280] sm:$0xf]
    %v229 = vld [vmem:[#allocation5 + $0x284] sm:$0xf]
    %v230 = vld [vmem:[#allocation5 + $0x288] sm:$0xf]
    %v231 = vld [vmem:[#allocation5 + $0x28c] sm:$0xf]
    %v232 = vld [vmem:[#allocation5 + $0x290] sm:$0xf]
    %v233 = vld [vmem:[#allocation5 + $0x294] sm:$0xf]
    %v234 = vld [vmem:[#allocation5 + $0x298] sm:$0xf]
    %v235 = vld [vmem:[#allocation5 + $0x29c] sm:$0xf]
    %v236 = vld [vmem:[#allocation5 + $0x2a0] sm:$0xf]
    %v237 = vld [vmem:[#allocation5 + $0x2a4] sm:$0xf]
    %v238 = vld [vmem:[#allocation5 + $0x2a8] sm:$0xf]
    %v239 = vld [vmem:[#allocation5 + $0x2ac] sm:$0xf]
    %v240 = vld [vmem:[#allocation5 + $0x2b0] sm:$0xf]
    %v241 = vld [vmem:[#allocation5 + $0x2b4] sm:$0xf]
    %v242 = vld [vmem:[#allocation5 + $0x2b8] sm:$0xf]
    %v243 = vld [vmem:[#allocation5 + $0x2bc] sm:$0xf]
    %v244 = vld [vmem:[#allocation5 + $0x2c0] sm:$0xf]
    %v245 = vld [vmem:[#allocation5 + $0x2c4] sm:$0xf]
    %v246 = vld [vmem:[#allocation5 + $0x2c8] sm:$0xf]
    %v247 = vld [vmem:[#allocation5 + $0x2cc] sm:$0xf]
    %v248 = vld [vmem:[#allocation5 + $0x2d0] sm:$0xf]
    %v249 = vld [vmem:[#allocation5 + $0x2d4] sm:$0xf]
    %v250 = vld [vmem:[#allocation5 + $0x2d8] sm:$0xf]
    %v251 = vld [vmem:[#allocation5 + $0x2dc] sm:$0xf]
    %v252 = vld [vmem:[#allocation5 + $0x2e0] sm:$0xf]
    %v253 = vld [vmem:[#allocation5 + $0x2e4] sm:$0xf]
    %v254 = vld [vmem:[#allocation5 + $0x2e8] sm:$0xf]
    %v255 = vld [vmem:[#allocation5 + $0x2ec] sm:$0xf]
    %v256 = vld [vmem:[#allocation5 + $0x2f0] sm:$0xf]
    %v257 = vld [vmem:[#allocation5 + $0x2f4] sm:$0xf]
    %v258 = vld [vmem:[#allocation5 + $0x2f8] sm:$0xf]
    %v259 = vld [vmem:[#allocation5 + $0x2fc] sm:$0xf]
    %v260 = vld [vmem:[%s2] sm:$0x1]
    %v262 = vlaneseq
    %v263 = vshrl.u32 %v262, 7
    %v264 = vsub.s32 0, %v263
    %v265 = vrot.slane %v260, %v264
    %v291 = vunpack.c.l.b16 %v44
    %v292 = vunpack.c.h.b16 %v44
    %v293 = vunpack.c.l.b16 %v45
    %v294 = vunpack.c.h.b16 %v45
    %v295 = vunpack.c.l.b16 %v46
    %v296 = vunpack.c.h.b16 %v46
    %v297 = vunpack.c.l.b16 %v47
    %v298 = vunpack.c.h.b16 %v47
    %v299 = vunpack.c.l.b16 %v48
    %v300 = vunpack.c.h.b16 %v48
    %v301 = vunpack.c.l.b16 %v49
    %v302 = vunpack.c.h.b16 %v49
    %v303 = vunpack.c.l.b16 %v50
    %v304 = vunpack.c.h.b16 %v50
    %v305 = vunpack.c.l.b16 %v51
    %v306 = vunpack.c.h.b16 %v51
    %v307 = vunpack.c.l.b16 %v52
    %v308 = vunpack.c.h.b16 %v52
    %v309 = vunpack.c.l.b16 %v53
    %v310 = vunpack.c.h.b16 %v53
    %v311 = vunpack.c.l.b16 %v54
    %v312 = vunpack.c.h.b16 %v54
    %v313 = vunpack.c.l.b16 %v55
    %v314 = vunpack.c.h.b16 %v55
    %v315 = vunpack.c.l.b16 %v56
    %v316 = vunpack.c.h.b16 %v56
    %v317 = vunpack.c.l.b16 %v57
    %v318 = vunpack.c.h.b16 %v57
    %v319 = vunpack.c.l.b16 %v58
    %v320 = vunpack.c.h.b16 %v58
    %v321 = vunpack.c.l.b16 %v59
    %v322 = vunpack.c.h.b16 %v59
    %v323 = vunpack.c.l.b16 %v60
    %v324 = vunpack.c.h.b16 %v60
    %v325 = vunpack.c.l.b16 %v61
    %v326 = vunpack.c.h.b16 %v61
    %v327 = vunpack.c.l.b16 %v62
    %v328 = vunpack.c.h.b16 %v62
    %v329 = vunpack.c.l.b16 %v63
    %v330 = vunpack.c.h.b16 %v63
    %v331 = vunpack.c.l.b16 %v64
    %v332 = vunpack.c.h.b16 %v64
    %v333 = vunpack.c.l.b16 %v65
    %v334 = vunpack.c.h.b16 %v65
    %v335 = vunpack.c.l.b16 %v66
    %v336 = vunpack.c.h.b16 %v66
    %v337 = vunpack.c.l.b16 %v67
    %v338 = vunpack.c.h.b16 %v67
    %v339 = vpack.c.b16 %v303, %v291
    %v340 = vpack.c.b16 %v304, %v292
    %v341 = vpack.c.b16 %v305, %v293
    %v342 = vpack.c.b16 %v306, %v294
    %v343 = vpack.c.b16 %v307, %v295
    %v344 = vpack.c.b16 %v308, %v296
    %v345 = vpack.c.b16 %v309, %v297
    %v346 = vpack.c.b16 %v310, %v298
    %v347 = vpack.c.b16 %v311, %v299
    %v348 = vpack.c.b16 %v312, %v300
    %v349 = vpack.c.b16 %v313, %v301
    %v350 = vpack.c.b16 %v314, %v302
    %v351 = vpack.c.b16 %v327, %v315
    %v352 = vpack.c.b16 %v328, %v316
    %v353 = vpack.c.b16 %v329, %v317
    %v354 = vpack.c.b16 %v330, %v318
    %v355 = vpack.c.b16 %v331, %v319
    %v356 = vpack.c.b16 %v332, %v320
    %v357 = vpack.c.b16 %v333, %v321
    %v358 = vpack.c.b16 %v334, %v322
    %v359 = vpack.c.b16 %v335, %v323
    %v360 = vpack.c.b16 %v336, %v324
    %v361 = vpack.c.b16 %v337, %v325
    %v362 = vpack.c.b16 %v338, %v326
    %v579 = vunpack.c.l.b16 %v68
    %v580 = vunpack.c.l.b16 %v69
    %v581 = vunpack.c.l.b16 %v70
    %v582 = vunpack.c.l.b16 %v71
    %v583 = vunpack.c.l.b16 %v72
    %v584 = vunpack.c.l.b16 %v73
    %v585 = vunpack.c.l.b16 %v74
    %v586 = vunpack.c.l.b16 %v75
    %v587 = vunpack.c.l.b16 %v76
    %v588 = vunpack.c.l.b16 %v77
    %v589 = vunpack.c.l.b16 %v78
    %v590 = vunpack.c.l.b16 %v79
    %v591 = vunpack.c.l.b16 %v80
    %v592 = vunpack.c.l.b16 %v81
    %v593 = vunpack.c.l.b16 %v82
    %v594 = vunpack.c.l.b16 %v83
    %v595 = vunpack.c.l.b16 %v84
    %v596 = vunpack.c.l.b16 %v85
    %v597 = vunpack.c.l.b16 %v86
    %v598 = vunpack.c.l.b16 %v87
    %v599 = vunpack.c.l.b16 %v88
    %v600 = vunpack.c.l.b16 %v89
    %v601 = vunpack.c.l.b16 %v90
    %v602 = vunpack.c.l.b16 %v91
    %v603 = vunpack.c.l.b16 %v92
    %v604 = vunpack.c.l.b16 %v93
    %v605 = vunpack.c.l.b16 %v94
    %v606 = vunpack.c.l.b16 %v95
    %v607 = vunpack.c.l.b16 %v96
    %v608 = vunpack.c.l.b16 %v97
    %v609 = vunpack.c.l.b16 %v98
    %v610 = vunpack.c.l.b16 %v99
    %v611 = vunpack.c.l.b16 %v100
    %v612 = vunpack.c.l.b16 %v101
    %v613 = vunpack.c.l.b16 %v102
    %v614 = vunpack.c.l.b16 %v103
    %v615 = vunpack.c.l.b16 %v104
    %v616 = vunpack.c.l.b16 %v105
    %v617 = vunpack.c.l.b16 %v106
    %v618 = vunpack.c.l.b16 %v107
    %v619 = vunpack.c.l.b16 %v108
    %v620 = vunpack.c.l.b16 %v109
    %v621 = vunpack.c.l.b16 %v110
    %v622 = vunpack.c.l.b16 %v111
    %v623 = vunpack.c.l.b16 %v112
    %v624 = vunpack.c.l.b16 %v113
    %v625 = vunpack.c.l.b16 %v114
    %v626 = vunpack.c.l.b16 %v115
    %v627 = vunpack.c.l.b16 %v116
    %v628 = vunpack.c.l.b16 %v117
    %v629 = vunpack.c.l.b16 %v118
    %v630 = vunpack.c.l.b16 %v119
    %v631 = vunpack.c.l.b16 %v120
    %v632 = vunpack.c.l.b16 %v121
    %v633 = vunpack.c.l.b16 %v122
    %v634 = vunpack.c.l.b16 %v123
    %v635 = vunpack.c.l.b16 %v124
    %v636 = vunpack.c.l.b16 %v125
    %v637 = vunpack.c.l.b16 %v126
    %v638 = vunpack.c.l.b16 %v127
    %v639 = vunpack.c.l.b16 %v128
    %v640 = vunpack.c.l.b16 %v129
    %v641 = vunpack.c.l.b16 %v130
    %v642 = vunpack.c.l.b16 %v131
    %v643 = vunpack.c.l.b16 %v132
    %v644 = vunpack.c.l.b16 %v133
    %v645 = vunpack.c.l.b16 %v134
    %v646 = vunpack.c.l.b16 %v135
    %v647 = vunpack.c.l.b16 %v136
    %v648 = vunpack.c.l.b16 %v137
    %v649 = vunpack.c.l.b16 %v138
    %v650 = vunpack.c.l.b16 %v139
    %v651 = vunpack.c.l.b16 %v140
    %v652 = vunpack.c.l.b16 %v141
    %v653 = vunpack.c.l.b16 %v142
    %v654 = vunpack.c.l.b16 %v143
    %v655 = vunpack.c.l.b16 %v144
    %v656 = vunpack.c.l.b16 %v145
    %v657 = vunpack.c.l.b16 %v146
    %v658 = vunpack.c.l.b16 %v147
    %v659 = vunpack.c.l.b16 %v148
    %v660 = vunpack.c.l.b16 %v149
    %v661 = vunpack.c.l.b16 %v150
    %v662 = vunpack.c.l.b16 %v151
    %v663 = vunpack.c.l.b16 %v152
    %v664 = vunpack.c.l.b16 %v153
    %v665 = vunpack.c.l.b16 %v154
    %v666 = vunpack.c.l.b16 %v155
    %v667 = vunpack.c.l.b16 %v156
    %v668 = vunpack.c.l.b16 %v157
    %v669 = vunpack.c.l.b16 %v158
    %v670 = vunpack.c.l.b16 %v159
    %v671 = vunpack.c.l.b16 %v160
    %v672 = vunpack.c.l.b16 %v161
    %v673 = vunpack.c.l.b16 %v162
    %v674 = vunpack.c.l.b16 %v163
    %v675 = vunpack.c.l.b16 %v164
    %v676 = vunpack.c.l.b16 %v165
    %v677 = vunpack.c.l.b16 %v166
    %v678 = vunpack.c.l.b16 %v167
    %v679 = vunpack.c.l.b16 %v168
    %v680 = vunpack.c.l.b16 %v169
    %v681 = vunpack.c.l.b16 %v170
    %v682 = vunpack.c.l.b16 %v171
    %v683 = vunpack.c.l.b16 %v172
    %v684 = vunpack.c.l.b16 %v173
    %v685 = vunpack.c.l.b16 %v174
    %v686 = vunpack.c.l.b16 %v175
    %v687 = vunpack.c.l.b16 %v176
    %v688 = vunpack.c.l.b16 %v177
    %v689 = vunpack.c.l.b16 %v178
    %v690 = vunpack.c.l.b16 %v179
    %v691 = vunpack.c.l.b16 %v180
    %v692 = vunpack.c.l.b16 %v181
    %v693 = vunpack.c.l.b16 %v182
    %v694 = vunpack.c.l.b16 %v183
    %v695 = vunpack.c.l.b16 %v184
    %v696 = vunpack.c.l.b16 %v185
    %v697 = vunpack.c.l.b16 %v186
    %v698 = vunpack.c.l.b16 %v187
    %v699 = vunpack.c.l.b16 %v188
    %v700 = vunpack.c.l.b16 %v189
    %v701 = vunpack.c.l.b16 %v190
    %v702 = vunpack.c.l.b16 %v191
    %v703 = vunpack.c.l.b16 %v192
    %v704 = vunpack.c.l.b16 %v193
    %v705 = vunpack.c.l.b16 %v194
    %v706 = vunpack.c.l.b16 %v195
    %v707 = vunpack.c.l.b16 %v196
    %v708 = vunpack.c.l.b16 %v197
    %v709 = vunpack.c.l.b16 %v198
    %v710 = vunpack.c.l.b16 %v199
    %v711 = vunpack.c.l.b16 %v200
    %v712 = vunpack.c.l.b16 %v201
    %v713 = vunpack.c.l.b16 %v202
    %v714 = vunpack.c.l.b16 %v203
    %v715 = vunpack.c.l.b16 %v204
    %v716 = vunpack.c.l.b16 %v205
    %v717 = vunpack.c.l.b16 %v206
    %v718 = vunpack.c.l.b16 %v207
    %v719 = vunpack.c.l.b16 %v208
    %v720 = vunpack.c.l.b16 %v209
    %v721 = vunpack.c.l.b16 %v210
    %v722 = vunpack.c.l.b16 %v211
    %v723 = vunpack.c.l.b16 %v212
    %v724 = vunpack.c.l.b16 %v213
    %v725 = vunpack.c.l.b16 %v214
    %v726 = vunpack.c.l.b16 %v215
    %v727 = vunpack.c.l.b16 %v216
    %v728 = vunpack.c.l.b16 %v217
    %v729 = vunpack.c.l.b16 %v218
    %v730 = vunpack.c.l.b16 %v219
    %v731 = vunpack.c.l.b16 %v220
    %v732 = vunpack.c.l.b16 %v221
    %v733 = vunpack.c.l.b16 %v222
    %v734 = vunpack.c.l.b16 %v223
    %v735 = vunpack.c.l.b16 %v224
    %v736 = vunpack.c.l.b16 %v225
    %v737 = vunpack.c.l.b16 %v226
    %v738 = vunpack.c.l.b16 %v227
    %v739 = vunpack.c.l.b16 %v228
    %v740 = vunpack.c.l.b16 %v229
    %v741 = vunpack.c.l.b16 %v230
    %v742 = vunpack.c.l.b16 %v231
    %v743 = vunpack.c.l.b16 %v232
    %v744 = vunpack.c.l.b16 %v233
    %v745 = vunpack.c.l.b16 %v234
    %v746 = vunpack.c.l.b16 %v235
    %v747 = vunpack.c.l.b16 %v236
    %v748 = vunpack.c.l.b16 %v237
    %v749 = vunpack.c.l.b16 %v238
    %v750 = vunpack.c.l.b16 %v239
    %v751 = vunpack.c.l.b16 %v240
    %v752 = vunpack.c.l.b16 %v241
    %v753 = vunpack.c.l.b16 %v242
    %v754 = vunpack.c.l.b16 %v243
    %v755 = vunpack.c.l.b16 %v244
    %v756 = vunpack.c.l.b16 %v245
    %v757 = vunpack.c.l.b16 %v246
    %v758 = vunpack.c.l.b16 %v247
    %v759 = vunpack.c.l.b16 %v248
    %v760 = vunpack.c.l.b16 %v249
    %v761 = vunpack.c.l.b16 %v250
    %v762 = vunpack.c.l.b16 %v251
    %v763 = vunpack.c.l.b16 %v252
    %v764 = vunpack.c.l.b16 %v253
    %v765 = vunpack.c.l.b16 %v254
    %v766 = vunpack.c.l.b16 %v255
    %v767 = vunpack.c.l.b16 %v256
    %v768 = vunpack.c.l.b16 %v257
    %v769 = vunpack.c.l.b16 %v258
    %v770 = vunpack.c.l.b16 %v259
    %v771 = vpack.c.b16 %v580, %v579
    %v772 = vpack.c.b16 %v582, %v581
    %v773 = vpack.c.b16 %v584, %v583
    %v774 = vpack.c.b16 %v586, %v585
    %v775 = vpack.c.b16 %v588, %v587
    %v776 = vpack.c.b16 %v590, %v589
    %v777 = vpack.c.b16 %v592, %v591
    %v778 = vpack.c.b16 %v594, %v593
    %v779 = vpack.c.b16 %v596, %v595
    %v780 = vpack.c.b16 %v598, %v597
    %v781 = vpack.c.b16 %v600, %v599
    %v782 = vpack.c.b16 %v602, %v601
    %v783 = vpack.c.b16 %v604, %v603
    %v784 = vpack.c.b16 %v606, %v605
    %v785 = vpack.c.b16 %v608, %v607
    %v786 = vpack.c.b16 %v610, %v609
    %v787 = vpack.c.b16 %v612, %v611
    %v788 = vpack.c.b16 %v614, %v613
    %v789 = vpack.c.b16 %v616, %v615
    %v790 = vpack.c.b16 %v618, %v617
    %v791 = vpack.c.b16 %v620, %v619
    %v792 = vpack.c.b16 %v622, %v621
    %v793 = vpack.c.b16 %v624, %v623
    %v794 = vpack.c.b16 %v626, %v625
    %v795 = vpack.c.b16 %v628, %v627
    %v796 = vpack.c.b16 %v630, %v629
    %v797 = vpack.c.b16 %v632, %v631
    %v798 = vpack.c.b16 %v634, %v633
    %v799 = vpack.c.b16 %v636, %v635
    %v800 = vpack.c.b16 %v638, %v637
    %v801 = vpack.c.b16 %v640, %v639
    %v802 = vpack.c.b16 %v642, %v641
    %v803 = vpack.c.b16 %v644, %v643
    %v804 = vpack.c.b16 %v646, %v645
    %v805 = vpack.c.b16 %v648, %v647
    %v806 = vpack.c.b16 %v650, %v649
    %v807 = vpack.c.b16 %v652, %v651
    %v808 = vpack.c.b16 %v654, %v653
    %v809 = vpack.c.b16 %v656, %v655
    %v810 = vpack.c.b16 %v658, %v657
    %v811 = vpack.c.b16 %v660, %v659
    %v812 = vpack.c.b16 %v662, %v661
    %v813 = vpack.c.b16 %v664, %v663
    %v814 = vpack.c.b16 %v666, %v665
    %v815 = vpack.c.b16 %v668, %v667
    %v816 = vpack.c.b16 %v670, %v669
    %v817 = vpack.c.b16 %v672, %v671
    %v818 = vpack.c.b16 %v674, %v673
    %v819 = vpack.c.b16 %v676, %v675
    %v820 = vpack.c.b16 %v678, %v677
    %v821 = vpack.c.b16 %v680, %v679
    %v822 = vpack.c.b16 %v682, %v681
    %v823 = vpack.c.b16 %v684, %v683
    %v824 = vpack.c.b16 %v686, %v685
    %v825 = vpack.c.b16 %v688, %v687
    %v826 = vpack.c.b16 %v690, %v689
    %v827 = vpack.c.b16 %v692, %v691
    %v828 = vpack.c.b16 %v694, %v693
    %v829 = vpack.c.b16 %v696, %v695
    %v830 = vpack.c.b16 %v698, %v697
    %v831 = vpack.c.b16 %v700, %v699
    %v832 = vpack.c.b16 %v702, %v701
    %v833 = vpack.c.b16 %v704, %v703
    %v834 = vpack.c.b16 %v706, %v705
    %v835 = vpack.c.b16 %v708, %v707
    %v836 = vpack.c.b16 %v710, %v709
    %v837 = vpack.c.b16 %v712, %v711
    %v838 = vpack.c.b16 %v714, %v713
    %v839 = vpack.c.b16 %v716, %v715
    %v840 = vpack.c.b16 %v718, %v717
    %v841 = vpack.c.b16 %v720, %v719
    %v842 = vpack.c.b16 %v722, %v721
    %v843 = vpack.c.b16 %v724, %v723
    %v844 = vpack.c.b16 %v726, %v725
    %v845 = vpack.c.b16 %v728, %v727
    %v846 = vpack.c.b16 %v730, %v729
    %v847 = vpack.c.b16 %v732, %v731
    %v848 = vpack.c.b16 %v734, %v733
    %v849 = vpack.c.b16 %v736, %v735
    %v850 = vpack.c.b16 %v738, %v737
    %v851 = vpack.c.b16 %v740, %v739
    %v852 = vpack.c.b16 %v742, %v741
    %v853 = vpack.c.b16 %v744, %v743
    %v854 = vpack.c.b16 %v746, %v745
    %v855 = vpack.c.b16 %v748, %v747
    %v856 = vpack.c.b16 %v750, %v749
    %v857 = vpack.c.b16 %v752, %v751
    %v858 = vpack.c.b16 %v754, %v753
    %v859 = vpack.c.b16 %v756, %v755
    %v860 = vpack.c.b16 %v758, %v757
    %v861 = vpack.c.b16 %v760, %v759
    %v862 = vpack.c.b16 %v762, %v761
    %v863 = vpack.c.b16 %v764, %v763
    %v864 = vpack.c.b16 %v766, %v765
    %v865 = vpack.c.b16 %v768, %v767
    %v866 = vpack.c.b16 %v770, %v769
    %963 = vmatprep.subr.bf16.mxu0 0
    %964 = vmatpush1.bf16.msra.mxu0 %v771
    %965 = vmatprep.subr.bf16.mxu0 0
    %966 = vmatpush1.bf16.msra.mxu0 %v772
    %967 = vmatprep.subr.bf16.mxu0 0
    %968 = vmatpush1.bf16.msra.mxu0 %v773
    %969 = vmatprep.subr.bf16.mxu0 0
    %970 = vmatpush1.bf16.msra.mxu0 %v774
    %971 = vmatprep.subr.bf16.mxu0 0
    %972 = vmatpush1.bf16.msra.mxu0 %v775
    %973 = vmatprep.subr.bf16.mxu0 0
    %974 = vmatpush1.bf16.msra.mxu0 %v776
    %975 = vmatprep.subr.bf16.mxu0 0
    %976 = vmatpush1.bf16.msra.mxu0 %v777
    %977 = vmatprep.subr.bf16.mxu0 0
    %978 = vmatpush1.bf16.msra.mxu0 %v778
    %979 = vmatprep.subr.bf16.mxu0 0
    %980 = vmatpush1.bf16.msra.mxu0 %v779
    %981 = vmatprep.subr.bf16.mxu0 0
    %982 = vmatpush1.bf16.msra.mxu0 %v780
    %983 = vmatprep.subr.bf16.mxu0 0
    %984 = vmatpush1.bf16.msra.mxu0 %v781
    %985 = vmatprep.subr.bf16.mxu0 0
    %986 = vmatpush1.bf16.msra.mxu0 %v782
    %987 = vmatprep.subr.bf16.mxu0 0
    %988 = vmatpush1.bf16.msra.mxu0 %v783
    %989 = vmatprep.subr.bf16.mxu0 0
    %990 = vmatpush1.bf16.msra.mxu0 %v784
    %991 = vmatprep.subr.bf16.mxu0 0
    %992 = vmatpush1.bf16.msra.mxu0 %v785
    %993 = vmatprep.subr.bf16.mxu0 0
    %994 = vmatpush1.bf16.msra.mxu0 %v786
    %995 = vmatprep.mubr.bf16.mxu0 %v340
    %996 = vmatmul.mubr.bf16.gmra.mrb[0].mxu0 %v339
    %v997 = vpop.f32.mrb[0].mxu0
    %v998 = vadd.f32 %v265, %v997
    %v999 = vpop.f32.mrb[0].mxu0
    %v1000 = vpop.f32.mrb[0].mxu0
    %v1001 = vadd.f32 %v265, %v1000
    %v1002 = vpop.f32.mrb[0].mxu0
    %1003 = vmatprep.mubr.bf16.mxu0 %v352
    %1004 = vmatmul.mubr.bf16.gmra.mrb[0].mxu0 %v351
    %v1005 = vpop.f32.mrb[0].mxu0
    %v1006 = vadd.f32 %v265, %v1005
    %v1007 = vpop.f32.mrb[0].mxu0
    %v1008 = vpop.f32.mrb[0].mxu0
    %v1009 = vadd.f32 %v265, %v1008
    %v1010 = vpop.f32.mrb[0].mxu0
    %1011 = vdwg.mxu0
    %1012 = vmatprep.subr.bf16.mxu0 0
    %1013 = vmatpush1.bf16.msra.mxu0 %v787
    %1014 = vmatprep.subr.bf16.mxu0 0
    %1015 = vmatpush1.bf16.msra.mxu0 %v788
    %1016 = vmatprep.subr.bf16.mxu0 0
    %1017 = vmatpush1.bf16.msra.mxu0 %v789
    %1018 = vmatprep.subr.bf16.mxu0 0
    %1019 = vmatpush1.bf16.msra.mxu0 %v790
    %1020 = vmatprep.subr.bf16.mxu0 0
    %1021 = vmatpush1.bf16.msra.mxu0 %v791
    %1022 = vmatprep.subr.bf16.mxu0 0
    %1023 = vmatpush1.bf16.msra.mxu0 %v792
    %1024 = vmatprep.subr.bf16.mxu0 0
    %1025 = vmatpush1.bf16.msra.mxu0 %v793
    %1026 = vmatprep.subr.bf16.mxu0 0
    %1027 = vmatpush1.bf16.msra.mxu0 %v794
    %1028 = vmatprep.subr.bf16.mxu0 0
    %1029 = vmatpush1.bf16.msra.mxu0 %v795
    %1030 = vmatprep.subr.bf16.mxu0 0
    %1031 = vmatpush1.bf16.msra.mxu0 %v796
    %1032 = vmatprep.subr.bf16.mxu0 0
    %1033 = vmatpush1.bf16.msra.mxu0 %v797
    %1034 = vmatprep.subr.bf16.mxu0 0
    %1035 = vmatpush1.bf16.msra.mxu0 %v798
    %1036 = vmatprep.subr.bf16.mxu0 0
    %1037 = vmatpush1.bf16.msra.mxu0 %v799
    %1038 = vmatprep.subr.bf16.mxu0 0
    %1039 = vmatpush1.bf16.msra.mxu0 %v800
    %1040 = vmatprep.subr.bf16.mxu0 0
    %1041 = vmatpush1.bf16.msra.mxu0 %v801
    %1042 = vmatprep.subr.bf16.mxu0 0
    %1043 = vmatpush1.bf16.msra.mxu0 %v802
    %1044 = vmatprep.mubr.bf16.mxu0 %v342
    %1045 = vmatmul.mubr.bf16.gmra.mrb[0].mxu0 %v341
    %v1046 = vpop.f32.mrb[0].mxu0
    %v1047 = vadd.f32 %v998, %v1046
    %v1048 = vpop.f32.mrb[0].mxu0
    %v1049 = vpop.f32.mrb[0].mxu0
    %v1050 = vadd.f32 %v1001, %v1049
    %v1051 = vpop.f32.mrb[0].mxu0
    %1052 = vmatprep.mubr.bf16.mxu0 %v354
    %1053 = vmatmul.mubr.bf16.gmra.mrb[0].mxu0 %v353
    %v1054 = vpop.f32.mrb[0].mxu0
    %v1055 = vadd.f32 %v1006, %v1054
    %v1056 = vpop.f32.mrb[0].mxu0
    %v1057 = vpop.f32.mrb[0].mxu0
    %v1058 = vadd.f32 %v1009, %v1057
    %v1059 = vpop.f32.mrb[0].mxu0
    %1060 = vdwg.mxu0
    %1061 = vmatprep.subr.bf16.mxu0 0
    %1062 = vmatpush1.bf16.msra.mxu0 %v803
    %1063 = vmatprep.subr.bf16.mxu0 0
    %1064 = vmatpush1.bf16.msra.mxu0 %v804
    %1065 = vmatprep.subr.bf16.mxu0 0
    %1066 = vmatpush1.bf16.msra.mxu0 %v805
    %1067 = vmatprep.subr.bf16.mxu0 0
    %1068 = vmatpush1.bf16.msra.mxu0 %v806
    %1069 = vmatprep.subr.bf16.mxu0 0
    %1070 = vmatpush1.bf16.msra.mxu0 %v807
    %1071 = vmatprep.subr.bf16.mxu0 0
    %1072 = vmatpush1.bf16.msra.mxu0 %v808
    %1073 = vmatprep.subr.bf16.mxu0 0
    %1074 = vmatpush1.bf16.msra.mxu0 %v809
    %1075 = vmatprep.subr.bf16.mxu0 0
    %1076 = vmatpush1.bf16.msra.mxu0 %v810
    %1077 = vmatprep.subr.bf16.mxu0 0
    %1078 = vmatpush1.bf16.msra.mxu0 %v811
    %1079 = vmatprep.subr.bf16.mxu0 0
    %1080 = vmatpush1.bf16.msra.mxu0 %v812
    %1081 = vmatprep.subr.bf16.mxu0 0
    %1082 = vmatpush1.bf16.msra.mxu0 %v813
    %1083 = vmatprep.subr.bf16.mxu0 0
    %1084 = vmatpush1.bf16.msra.mxu0 %v814
    %1085 = vmatprep.subr.bf16.mxu0 0
    %1086 = vmatpush1.bf16.msra.mxu0 %v815
    %1087 = vmatprep.subr.bf16.mxu0 0
    %1088 = vmatpush1.bf16.msra.mxu0 %v816
    %1089 = vmatprep.subr.bf16.mxu0 0
    %1090 = vmatpush1.bf16.msra.mxu0 %v817
    %1091 = vmatprep.subr.bf16.mxu0 0
    %1092 = vmatpush1.bf16.msra.mxu0 %v818
    %1093 = vmatprep.mubr.bf16.mxu0 %v344
    %1094 = vmatmul.mubr.bf16.gmra.mrb[0].mxu0 %v343
    %v1095 = vpop.f32.mrb[0].mxu0
    %v1096 = vadd.f32 %v1047, %v1095
    %v1097 = vpop.f32.mrb[0].mxu0
    %v1098 = vpop.f32.mrb[0].mxu0
    %v1099 = vadd.f32 %v1050, %v1098
    %v1100 = vpop.f32.mrb[0].mxu0
    %1101 = vmatprep.mubr.bf16.mxu0 %v356
    %1102 = vmatmul.mubr.bf16.gmra.mrb[0].mxu0 %v355
    %v1103 = vpop.f32.mrb[0].mxu0
    %v1104 = vadd.f32 %v1055, %v1103
    %v1105 = vpop.f32.mrb[0].mxu0
    %v1106 = vpop.f32.mrb[0].mxu0
    %v1107 = vadd.f32 %v1058, %v1106
    %v1108 = vpop.f32.mrb[0].mxu0
    %1109 = vdwg.mxu0
    %1110 = vmatprep.subr.bf16.mxu0 0
    %1111 = vmatpush1.bf16.msra.mxu0 %v819
    %1112 = vmatprep.subr.bf16.mxu0 0
    %1113 = vmatpush1.bf16.msra.mxu0 %v820
    %1114 = vmatprep.subr.bf16.mxu0 0
    %1115 = vmatpush1.bf16.msra.mxu0 %v821
    %1116 = vmatprep.subr.bf16.mxu0 0
    %1117 = vmatpush1.bf16.msra.mxu0 %v822
    %1118 = vmatprep.subr.bf16.mxu0 0
    %1119 = vmatpush1.bf16.msra.mxu0 %v823
    %1120 = vmatprep.subr.bf16.mxu0 0
    %1121 = vmatpush1.bf16.msra.mxu0 %v824
    %1122 = vmatprep.subr.bf16.mxu0 0
    %1123 = vmatpush1.bf16.msra.mxu0 %v825
    %1124 = vmatprep.subr.bf16.mxu0 0
    %1125 = vmatpush1.bf16.msra.mxu0 %v826
    %1126 = vmatprep.subr.bf16.mxu0 0
    %1127 = vmatpush1.bf16.msra.mxu0 %v827
    %1128 = vmatprep.subr.bf16.mxu0 0
    %1129 = vmatpush1.bf16.msra.mxu0 %v828
    %1130 = vmatprep.subr.bf16.mxu0 0
    %1131 = vmatpush1.bf16.msra.mxu0 %v829
    %1132 = vmatprep.subr.bf16.mxu0 0
    %1133 = vmatpush1.bf16.msra.mxu0 %v830
    %1134 = vmatprep.subr.bf16.mxu0 0
    %1135 = vmatpush1.bf16.msra.mxu0 %v831
    %1136 = vmatprep.subr.bf16.mxu0 0
    %1137 = vmatpush1.bf16.msra.mxu0 %v832
    %1138 = vmatprep.subr.bf16.mxu0 0
    %1139 = vmatpush1.bf16.msra.mxu0 %v833
    %1140 = vmatprep.subr.bf16.mxu0 0
    %1141 = vmatpush1.bf16.msra.mxu0 %v834
    %1142 = vmatprep.mubr.bf16.mxu0 %v346
    %1143 = vmatmul.mubr.bf16.gmra.mrb[0].mxu0 %v345
    %v1144 = vpop.f32.mrb[0].mxu0
    %v1145 = vadd.f32 %v1096, %v1144
    %v1146 = vpop.f32.mrb[0].mxu0
    %v1147 = vpop.f32.mrb[0].mxu0
    %v1148 = vadd.f32 %v1099, %v1147
    %v1149 = vpop.f32.mrb[0].mxu0
    %1150 = vmatprep.mubr.bf16.mxu0 %v358
    %1151 = vmatmul.mubr.bf16.gmra.mrb[0].mxu0 %v357
    %v1152 = vpop.f32.mrb[0].mxu0
    %v1153 = vadd.f32 %v1104, %v1152
    %v1154 = vpop.f32.mrb[0].mxu0
    %v1155 = vpop.f32.mrb[0].mxu0
    %v1156 = vadd.f32 %v1107, %v1155
    %v1157 = vpop.f32.mrb[0].mxu0
    %1158 = vdwg.mxu0
    %1159 = vmatprep.subr.bf16.mxu0 0
    %1160 = vmatpush1.bf16.msra.mxu0 %v835
    %1161 = vmatprep.subr.bf16.mxu0 0
    %1162 = vmatpush1.bf16.msra.mxu0 %v836
    %1163 = vmatprep.subr.bf16.mxu0 0
    %1164 = vmatpush1.bf16.msra.mxu0 %v837
    %1165 = vmatprep.subr.bf16.mxu0 0
    %1166 = vmatpush1.bf16.msra.mxu0 %v838
    %1167 = vmatprep.subr.bf16.mxu0 0
    %1168 = vmatpush1.bf16.msra.mxu0 %v839
    %1169 = vmatprep.subr.bf16.mxu0 0
    %1170 = vmatpush1.bf16.msra.mxu0 %v840
    %1171 = vmatprep.subr.bf16.mxu0 0
    %1172 = vmatpush1.bf16.msra.mxu0 %v841
    %1173 = vmatprep.subr.bf16.mxu0 0
    %1174 = vmatpush1.bf16.msra.mxu0 %v842
    %1175 = vmatprep.subr.bf16.mxu0 0
    %1176 = vmatpush1.bf16.msra.mxu0 %v843
    %1177 = vmatprep.subr.bf16.mxu0 0
    %1178 = vmatpush1.bf16.msra.mxu0 %v844
    %1179 = vmatprep.subr.bf16.mxu0 0
    %1180 = vmatpush1.bf16.msra.mxu0 %v845
    %1181 = vmatprep.subr.bf16.mxu0 0
    %1182 = vmatpush1.bf16.msra.mxu0 %v846
    %1183 = vmatprep.subr.bf16.mxu0 0
    %1184 = vmatpush1.bf16.msra.mxu0 %v847
    %1185 = vmatprep.subr.bf16.mxu0 0
    %1186 = vmatpush1.bf16.msra.mxu0 %v848
    %1187 = vmatprep.subr.bf16.mxu0 0
    %1188 = vmatpush1.bf16.msra.mxu0 %v849
    %1189 = vmatprep.subr.bf16.mxu0 0
    %1190 = vmatpush1.bf16.msra.mxu0 %v850
    %1191 = vmatprep.mubr.bf16.mxu0 %v348
    %1192 = vmatmul.mubr.bf16.gmra.mrb[0].mxu0 %v347
    %v1193 = vpop.f32.mrb[0].mxu0
    %v1194 = vadd.f32 %v1145, %v1193
    %v1195 = vpop.f32.mrb[0].mxu0
    %v1196 = vpop.f32.mrb[0].mxu0
    %v1197 = vadd.f32 %v1148, %v1196
    %v1198 = vpop.f32.mrb[0].mxu0
    %1199 = vmatprep.mubr.bf16.mxu0 %v360
    %1200 = vmatmul.mubr.bf16.gmra.mrb[0].mxu0 %v359
    %v1201 = vpop.f32.mrb[0].mxu0
    %v1202 = vadd.f32 %v1153, %v1201
    %v1203 = vpop.f32.mrb[0].mxu0
    %v1204 = vpop.f32.mrb[0].mxu0
    %v1205 = vadd.f32 %v1156, %v1204
    %v1206 = vpop.f32.mrb[0].mxu0
    %1207 = vdwg.mxu0
    %1208 = vmatprep.subr.bf16.mxu0 0
    %1209 = vmatpush1.bf16.msra.mxu0 %v851
    %1210 = vmatprep.subr.bf16.mxu0 0
    %1211 = vmatpush1.bf16.msra.mxu0 %v852
    %1212 = vmatprep.subr.bf16.mxu0 0
    %1213 = vmatpush1.bf16.msra.mxu0 %v853
    %1214 = vmatprep.subr.bf16.mxu0 0
    %1215 = vmatpush1.bf16.msra.mxu0 %v854
    %1216 = vmatprep.subr.bf16.mxu0 0
    %1217 = vmatpush1.bf16.msra.mxu0 %v855
    %1218 = vmatprep.subr.bf16.mxu0 0
    %1219 = vmatpush1.bf16.msra.mxu0 %v856
    %1220 = vmatprep.subr.bf16.mxu0 0
    %1221 = vmatpush1.bf16.msra.mxu0 %v857
    %1222 = vmatprep.subr.bf16.mxu0 0
    %1223 = vmatpush1.bf16.msra.mxu0 %v858
    %1224 = vmatprep.subr.bf16.mxu0 0
    %1225 = vmatpush1.bf16.msra.mxu0 %v859
    %1226 = vmatprep.subr.bf16.mxu0 0
    %1227 = vmatpush1.bf16.msra.mxu0 %v860
    %1228 = vmatprep.subr.bf16.mxu0 0
    %1229 = vmatpush1.bf16.msra.mxu0 %v861
    %1230 = vmatprep.subr.bf16.mxu0 0
    %1231 = vmatpush1.bf16.msra.mxu0 %v862
    %1232 = vmatprep.subr.bf16.mxu0 0
    %1233 = vmatpush1.bf16.msra.mxu0 %v863
    %1234 = vmatprep.subr.bf16.mxu0 0
    %1235 = vmatpush1.bf16.msra.mxu0 %v864
    %1236 = vmatprep.subr.bf16.mxu0 0
    %1237 = vmatpush1.bf16.msra.mxu0 %v865
    %1238 = vmatprep.subr.bf16.mxu0 0
    %1239 = vmatpush1.bf16.msra.mxu0 %v866
    %1240 = vmatprep.mubr.bf16.mxu0 %v350
    %1241 = vmatmul.mubr.bf16.gmra.mrb[0].mxu0 %v349
    %v1242 = vpop.f32.mrb[0].mxu0
    %v1243 = vadd.f32 %v1194, %v1242
    %v1244 = vpop.f32.mrb[0].mxu0
    %v1245 = vpop.f32.mrb[0].mxu0
    %v1246 = vadd.f32 %v1197, %v1245
    %v1247 = vpop.f32.mrb[0].mxu0
    %1248 = vmatprep.mubr.bf16.mxu0 %v362
    %1249 = vmatmul.mubr.bf16.gmra.mrb[0].mxu0 %v361
    %v1250 = vpop.f32.mrb[0].mxu0
    %v1251 = vadd.f32 %v1202, %v1250
    %v1252 = vpop.f32.mrb[0].mxu0
    %v1253 = vpop.f32.mrb[0].mxu0
    %v1254 = vadd.f32 %v1205, %v1253
    %v1255 = vpop.f32.mrb[0].mxu0
    %1256 = vdwg.mxu0
    %v1257 = vmax.f32 %v1243, 0.0
    %v1258 = vmax.f32 %v1246, 0.0
    %v1259 = vmax.f32 %v1251, 0.0
    %v1260 = vmax.f32 %v1254, 0.0
    %v1261 = vpack.c.bf16 %v1258, %v1257
    %v1262 = vpack.c.bf16 %v1260, %v1259
    %v1265 = vunpack.c.l.b16 %v1261
    %v1266 = vunpack.c.h.b16 %v1261
    %v1267 = vunpack.c.l.b16 %v1262
    %v1268 = vunpack.c.h.b16 %v1262
    %v1269 = vpack.c.b16 %v1265, %v1265
    %v1270 = vpack.c.b16 %v1266, %v1266
    %v1271 = vpack.c.b16 %v1267, %v1267
    %v1272 = vpack.c.b16 %v1268, %v1268
    %1277 = vst [vmem:[#allocation7] sm:$0xf] %v1269
    %1278 = vst [vmem:[#allocation7 + $0x4] sm:$0xf] %v1270
    %1279 = vst [vmem:[#allocation7 + $0x8] sm:$0xf] %v1271
    %1280 = vst [vmem:[#allocation7 + $0xc] sm:$0xf] %v1272
    // Predicated region
    $region22: #{tpu_custom_call.1} parent=1 // pred_check
      _
    $region23: #{tpu_custom_call.1} parent=1 // pred_check_branch
      %1282 = sbr.rel (0) target = $region25
    $region24: #{tpu_custom_call.1} parent=1 // pred_region
      %s1284 = ssub.s32 256, 256
      %1285 = vsyncadd [#allocation4], %s1284
      %s1286 = sshll.u32 [#allocation7], 4
      %s1287 = int_to_ptr.vmem [resolvable:$true] %s1286
      %1292 = dma.vmem_to_hbm [thread:$0]  %s1287, 256, %s3, [#allocation4], 64, 64, 4
    $region25: #{tpu_custom_call.1} parent=1 // pred_fallthru
      _
    // Predicated region
    $region26: #{tpu_custom_call.1} parent=1 // pred_check
      _
    $region27: #{tpu_custom_call.1} parent=1 // pred_check_branch
      %1294 = sbr.rel (0) target = $region29
    $region28: #{tpu_custom_call.1} parent=1 // pred_region
      %1295 = dma.done [#allocation4], 256
    $region29: #{tpu_custom_call.1} parent=1 // pred_fallthru
      _
    %1296 = vsyncpa [#allocation3], 1
    %1297 = vsyncpa [#allocation6], 1
    %1298 = vsyncpa [#allocation4], 1

</llo_original>
